<compile_context>
chip_gen: v5e
topology: v5e:2x2
jax: 0.10.0
libtpu: 0.0.40
codegen_flags: <defaults>
</compile_context>

<pallas_src>
import functools

import jax
import jax.numpy as jnp
from jax.experimental import pallas as pl
from jax.experimental.pallas import tpu as pltpu

LANE = 128  # TPU lane width: keep all feature/class dims lane-dense.


def _round_up(x, m):
    return ((x + m - 1) // m) * m


def _pad2(x, rows, cols):
    return jnp.pad(x, ((0, rows - x.shape[0]), (0, cols - x.shape[1])))


# ---------------------------------------------------------------------------
# Fused Pallas kernel: conv1 + ReLU + conv2 + mean_nodes, one graph per step
# ---------------------------------------------------------------------------
def fused_gcn_kernel(adj_ref, h_ref, w_ref, b_ref, out_ref, *, f_in_p, h_p, c_p):
    """Per grid step (one graph):

         X   = relu( A @ (H @ W1) + b1 )               # conv1, reassociated
         out = (colmean(A) @ X) @ W2 + b2              # conv2 + mean_nodes
               (mean_dst(A @ Z + b2) = colmean(A) @ Z + b2; fold valid because
                conv2 has no nonlinearity and the bias is uniform per node.)

       bf16 matmul operands, f32 accumulation; elementwise work stays f32.
    """
    a = adj_ref[...]                          # [N, N]        bf16
    h = h_ref[...]                            # [N, f_in_p]   bf16
    w1 = w_ref[0:f_in_p, 0:h_p]               # [f_in_p, h_p] bf16 (static view)
    w2 = w_ref[f_in_p:f_in_p + h_p, 0:c_p]    # [h_p, c_p]    bf16
    b1 = b_ref[0:1, 0:h_p]                    # [1, h_p]      f32
    b2 = b_ref[1:2, 0:c_p]                    # [1, c_p]      f32

    # conv1: project features first (small contraction), then aggregate
    # neighbors with the edge-norm adjacency.
    p1 = jnp.dot(h, w1, preferred_element_type=jnp.float32)             # [N, h_p]
    x = jnp.dot(a, p1.astype(jnp.bfloat16),
                preferred_element_type=jnp.float32)                     # [N, h_p]
    x = jnp.maximum(x + b1, 0.0)                                        # ReLU, f32

    # conv2 + mean_nodes folded; pool BEFORE the W2 projection so the pooling
    # is a lane-dense [1, N] MXU row matmul and the W2 matmul has M=1.
    pool = jnp.mean(a.astype(jnp.float32), axis=0, keepdims=True)       # [1, N]
    xp = jnp.dot(pool.astype(jnp.bfloat16), x.astype(jnp.bfloat16),
                 preferred_element_type=jnp.float32)                    # [1, h_p]
    out = jnp.dot(xp.astype(jnp.bfloat16), w2,
                  preferred_element_type=jnp.float32) + b2              # [1, c_p]

    # 8-sublane, lane-dense unmasked store; wrapper reads back row 0.
    out_ref[...] = jnp.broadcast_to(out, out_ref.shape).astype(out_ref.dtype)


# ---------------------------------------------------------------------------
# One-time prep (hoisted out of the per-forward hot path)
# ---------------------------------------------------------------------------
def prepare_params(params):
    """Pack (W1||W2) into one bf16 buffer and (b1||b2) into one f32 buffer."""
    w1, b1, w2, b2 = params
    f_in, h_feats = w1.shape
    n_cls = w2.shape[1]
    f_in_p = _round_up(f_in, LANE)
    h_p = _round_up(h_feats, LANE)
    c_p = _round_up(n_cls, LANE)
    wcols = max(h_p, c_p)

    w_cat = jnp.concatenate(
        [_pad2(w1, f_in_p, wcols), _pad2(w2, h_p, wcols)], axis=0
    ).astype(jnp.bfloat16)                                   # [f_in_p + h_p, wcols]
    b_cat = jnp.concatenate(
        [_pad2(b1, 1, wcols), _pad2(b2, 1, wcols)], axis=0
    ).astype(jnp.float32)                                    # [2, wcols]

    dims = dict(f_in=f_in, f_in_p=f_in_p, h_p=h_p, c_p=c_p,
                n_cls=n_cls, wcols=wcols)
    return w_cat, b_cat, dims


def prepare_graphs(adj_norm):
    """Graph-structure constant: bf16 edge-norm adjacency, cast once."""
    return adj_norm.astype(jnp.bfloat16)


def make_forward(dims):
    f_in, f_in_p = dims["f_in"], dims["f_in_p"]
    h_p, c_p, n_cls, wcols = dims["h_p"], dims["c_p"], dims["n_cls"], dims["wcols"]
    kernel = functools.partial(fused_gcn_kernel, f_in_p=f_in_p, h_p=h_p, c_p=c_p)

    @jax.jit
    def forward(features, adj_bf, w_cat, b_cat):
        b, n, _ = features.shape
        feats_bf = jnp.pad(
            features, ((0, 0), (0, 0), (0, f_in_p - f_in))).astype(jnp.bfloat16)

        out = pl.pallas_call(
            kernel,
            out_shape=jax.ShapeDtypeStruct((b, 8, c_p), jnp.float32),
            grid=(b,),
            in_specs=[
                pl.BlockSpec((None, n, n), lambda i: (i, 0, 0)),         # A
                pl.BlockSpec((None, n, f_in_p), lambda i: (i, 0, 0)),    # H
                pl.BlockSpec((f_in_p + h_p, wcols), lambda i: (0, 0)),   # W1||W2
                pl.BlockSpec((2, wcols), lambda i: (0, 0)),              # b1||b2
            ],
            out_specs=pl.BlockSpec((None, 8, c_p), lambda i: (i, 0, 0)),
            compiler_params=pltpu.CompilerParams(
                dimension_semantics=("parallel",)),
        )(adj_bf, feats_bf, w_cat, b_cat)

        return out[:, 0, :n_cls]                            # [B, n_cls]

    return forward


# ---------------------------------------------------------------------------
# Deterministic setup + run
# ---------------------------------------------------------------------------
def linear_init(key, fan_in, fan_out):
    """Match nn.Linear default init (uniform +/- 1/sqrt(fan_in))."""
    kw, kb = jax.random.split(key)
    bound = 1.0 / jnp.sqrt(fan_in)
    w = jax.random.uniform(kw, (fan_in, fan_out), jnp.float32, -bound, bound)
    b = jax.random.uniform(kb, (1, fan_out), jnp.float32, -bound, bound)
    return w, b


if __name__ == "__main__":
    B = 8             # batch of graphs (one graph per grid step)
    N = 16            # nodes per graph
    IN_FEATS = 32
    H_FEATS = 32
    NUM_CLASSES = 8

    key = jax.random.PRNGKey(0)
    k_feat, k_adj, k_w1, k_w2 = jax.random.split(key, 4)

    # Node features [B, N, IN_FEATS]
    features = jax.random.normal(k_feat, (B, N, IN_FEATS), jnp.float32)

    # Undirected random graphs with self loops.  Symmetrizing the mask makes
    # in-degree == out-degree, so the symmetric norm 1/sqrt(deg_i * deg_j)
    # matches DGL's 'both' GCN normalization on these graphs.
    rand_mask = (jax.random.uniform(k_adj, (B, N, N)) < 0.3).astype(jnp.float32)
    edge_mask = jnp.maximum(rand_mask, jnp.swapaxes(rand_mask, 1, 2))
    edge_mask = jnp.maximum(edge_mask, jnp.eye(N, dtype=jnp.float32)[None])
    deg = jnp.sum(edge_mask, axis=2)
    inv_sqrt_deg = 1.0 / jnp.sqrt(deg)
    adj_norm = edge_mask * inv_sqrt_deg[:, :, None] * inv_sqrt_deg[:, None, :]

    # Linear layer parameters (conv1.linear, conv2.linear); W stored [in, out].
    w1, b1 = linear_init(k_w1, IN_FEATS, H_FEATS)
    w2, b2 = linear_init(k_w2, H_FEATS, NUM_CLASSES)

    # One-time prep (graph constants + packed params), hoisted off the hot path.
    w_cat, b_cat, dims = prepare_params((w1, b1, w2, b2))
    adj_bf = prepare_graphs(adj_norm)
    forward = make_forward(dims)

    out = forward(features, adj_bf, w_cat, b_cat)
    out = jax.block_until_ready(out)
    assert out.shape == (B, NUM_CLASSES)

    # (1) Tight check vs. a pure-JAX reference following the same bf16-operand /
    #     f32-accumulate path as the kernel.
    def ref_bf16(a, h):
        a_bf = a.astype(jnp.bfloat16)
        p1 = jnp.dot(h.astype(jnp.bfloat16), w1.astype(jnp.bfloat16),
                     preferred_element_type=jnp.float32)
        x = jnp.maximum(jnp.dot(a_bf, p1.astype(jnp.bfloat16),
                                preferred_element_type=jnp.float32) + b1, 0.0)
        pool = jnp.mean(a_bf.astype(jnp.float32), axis=0, keepdims=True)
        xp = jnp.dot(pool.astype(jnp.bfloat16), x.astype(jnp.bfloat16),
                     preferred_element_type=jnp.float32)
        return (jnp.dot(xp.astype(jnp.bfloat16), w2.astype(jnp.bfloat16),
                        preferred_element_type=jnp.float32) + b2)[0]

    ref1 = jax.vmap(ref_bf16)(adj_norm, features)
    assert jnp.allclose(out, ref1, atol=2e-3), (out, ref1)

    # (2) Loose sanity check vs. the full-precision module semantics
    #     x = relu(conv1); x = conv2(x); mean_nodes  (difference = bf16 rounding).
    def ref_f32(a, h):
        x = jnp.maximum(a @ h @ w1 + b1, 0.0)
        z = a @ x @ w2 + b2
        return jnp.mean(z, axis=0)

    ref2 = jax.vmap(ref_f32)(adj_norm, features)
    assert jnp.allclose(out, ref2, atol=5e-2), (out, ref2)

    print("KERNEL_OK")
</pallas_src>

<mosaic_0001>
module attributes {stable_mosaic.version = 11 : i64} {
  func.func @fused_gcn_kernel(%arg0: i32, %arg1: memref<1x16x16xbf16, #tpu.memory_space<vmem>>, %arg2: memref<1x16x128xbf16, #tpu.memory_space<vmem>>, %arg3: memref<256x128xbf16, #tpu.memory_space<vmem>>, %arg4: memref<2x128xf32, #tpu.memory_space<vmem>>, %arg5: memref<1x8x128xf32, #tpu.memory_space<vmem>>) attributes {dimension_semantics = [#tpu.dimension_semantics<parallel>], iteration_bounds = array<i64: 8>, scalar_prefetch = 0 : i64, scratch_operands = 0 : i64, tpu.core_type = #tpu.core_type<tc>, window_params = [{transform_indices = @transform_0, window_bounds = array<i64: 1, 16, 16>}, {transform_indices = @transform_1, window_bounds = array<i64: 1, 16, 128>}, {pipeline_mode = #tpu.pipeline_mode<synchronous>, transform_indices = @transform_2, window_bounds = array<i64: 256, 128>}, {pipeline_mode = #tpu.pipeline_mode<synchronous>, transform_indices = @transform_3, window_bounds = array<i64: 2, 128>}, {transform_indices = @transform_4, window_bounds = array<i64: 1, 8, 128>}]} {
    %c0 = arith.constant 0 : index
    %c0_0 = arith.constant 0 : index
    %c0_1 = arith.constant 0 : index
    %0 = vector.load %arg1[%c0, %c0_0, %c0_1] : memref<1x16x16xbf16, #tpu.memory_space<vmem>>, vector<1x16x16xbf16>
    %1 = vector.shape_cast %0 : vector<1x16x16xbf16> to vector<16x16xbf16>
    %c0_2 = arith.constant 0 : index
    %c0_3 = arith.constant 0 : index
    %c0_4 = arith.constant 0 : index
    %2 = vector.load %arg2[%c0_2, %c0_3, %c0_4] : memref<1x16x128xbf16, #tpu.memory_space<vmem>>, vector<1x16x128xbf16>
    %3 = vector.shape_cast %2 : vector<1x16x128xbf16> to vector<16x128xbf16>
    %c0_5 = arith.constant 0 : index
    %c0_6 = arith.constant 0 : index
    %4 = vector.load %arg3[%c0_5, %c0_6] : memref<256x128xbf16, #tpu.memory_space<vmem>>, vector<128x128xbf16>
    %c128 = arith.constant 128 : index
    %c0_7 = arith.constant 0 : index
    %5 = vector.load %arg3[%c128, %c0_7] : memref<256x128xbf16, #tpu.memory_space<vmem>>, vector<128x128xbf16>
    %c0_8 = arith.constant 0 : index
    %c0_9 = arith.constant 0 : index
    %6 = vector.load %arg4[%c0_8, %c0_9] : memref<2x128xf32, #tpu.memory_space<vmem>>, vector<1x128xf32>
    %c1 = arith.constant 1 : index
    %c0_10 = arith.constant 0 : index
    %7 = vector.load %arg4[%c1, %c0_10] : memref<2x128xf32, #tpu.memory_space<vmem>>, vector<1x128xf32>
    %cst = arith.constant dense<0.000000e+00> : vector<16x128xf32>
    %8 = tpu.matmul %3, %4, %cst {dimension_numbers = #tpu.dot_dimension_numbers<[1], [0], [0], [1], [0, 0, 1, 1], [], []>} : vector<16x128xbf16>, vector<128x128xbf16>, vector<16x128xf32> -> vector<16x128xf32>
    %9 = arith.truncf %8 : vector<16x128xf32> to vector<16x128xbf16>
    %cst_11 = arith.constant dense<0.000000e+00> : vector<16x128xf32>
    %10 = tpu.matmul %1, %9, %cst_11 {dimension_numbers = #tpu.dot_dimension_numbers<[1], [0], [0], [1], [0, 0, 1, 1], [], []>} : vector<16x16xbf16>, vector<16x128xbf16>, vector<16x128xf32> -> vector<16x128xf32>
    %11 = vector.broadcast %6 : vector<1x128xf32> to vector<16x128xf32>
    %12 = arith.addf %10, %11 : vector<16x128xf32>
    %cst_12 = arith.constant 0.000000e+00 : f32
    %13 = vector.broadcast %cst_12 : f32 to vector<16x128xf32>
    %14 = arith.maximumf %12, %13 : vector<16x128xf32>
    %15 = arith.extf %1 : vector<16x16xbf16> to vector<16x16xf32>
    %cst_13 = arith.constant dense<0.000000e+00> : vector<16xf32>
    %16 = vector.multi_reduction <add>, %15, %cst_13 [0] : vector<16x16xf32> to vector<16xf32>
    %17 = vector.shape_cast %16 : vector<16xf32> to vector<1x16xf32>
    %cst_14 = arith.constant 1.600000e+01 : f32
    %18 = vector.broadcast %cst_14 : f32 to vector<1x16xf32>
    %19 = arith.divf %17, %18 : vector<1x16xf32>
    %20 = arith.truncf %19 : vector<1x16xf32> to vector<1x16xbf16>
    %21 = arith.truncf %14 : vector<16x128xf32> to vector<16x128xbf16>
    %cst_15 = arith.constant dense<0.000000e+00> : vector<1x128xf32>
    %22 = tpu.matmul %20, %21, %cst_15 {dimension_numbers = #tpu.dot_dimension_numbers<[1], [0], [0], [1], [0, 0, 1, 1], [], []>} : vector<1x16xbf16>, vector<16x128xbf16>, vector<1x128xf32> -> vector<1x128xf32>
    %23 = arith.truncf %22 : vector<1x128xf32> to vector<1x128xbf16>
    %cst_16 = arith.constant dense<0.000000e+00> : vector<1x128xf32>
    %24 = tpu.matmul %23, %5, %cst_16 {dimension_numbers = #tpu.dot_dimension_numbers<[1], [0], [0], [1], [0, 0, 1, 1], [], []>} : vector<1x128xbf16>, vector<128x128xbf16>, vector<1x128xf32> -> vector<1x128xf32>
    %25 = arith.addf %24, %7 : vector<1x128xf32>
    %26 = vector.shape_cast %25 : vector<1x128xf32> to vector<1x128xf32>
    %27 = vector.broadcast %26 : vector<1x128xf32> to vector<8x128xf32>
    %c0_17 = arith.constant 0 : index
    %c0_18 = arith.constant 0 : index
    %c0_19 = arith.constant 0 : index
    %28 = vector.load %arg5[%c0_17, %c0_18, %c0_19] : memref<1x8x128xf32, #tpu.memory_space<vmem>>, vector<1x8x128xf32>
    %29 = vector.shape_cast %28 : vector<1x8x128xf32> to vector<8x128xf32>
    %30 = vector.shape_cast %27 : vector<8x128xf32> to vector<1x8x128xf32>
    tpu.vector_store %arg5[%c0_17, %c0_18, %c0_19], %30 {strides = array<i32>} : memref<1x8x128xf32, #tpu.memory_space<vmem>>, vector<1x8x128xf32>,
    return
  }
  func.func @transform_0(%arg0: i32) -> (i32, i32, i32) {
    %c0_i32 = arith.constant 0 : i32
    %c0_i32_0 = arith.constant 0 : i32
    %c0_i32_1 = arith.constant 0 : i32
    return %arg0, %c0_i32, %c0_i32_0 : i32, i32, i32
  }
  func.func @transform_1(%arg0: i32) -> (i32, i32, i32) {
    %c0_i32 = arith.constant 0 : i32
    %c0_i32_0 = arith.constant 0 : i32
    %c0_i32_1 = arith.constant 0 : i32
    return %arg0, %c0_i32, %c0_i32_0 : i32, i32, i32
  }
  func.func @transform_2(%arg0: i32) -> (i32, i32) {
    %c0_i32 = arith.constant 0 : i32
    %c0_i32_0 = arith.constant 0 : i32
    %c0_i32_1 = arith.constant 0 : i32
    return %c0_i32, %c0_i32_0 : i32, i32
  }
  func.func @transform_3(%arg0: i32) -> (i32, i32) {
    %c0_i32 = arith.constant 0 : i32
    %c0_i32_0 = arith.constant 0 : i32
    %c0_i32_1 = arith.constant 0 : i32
    return %c0_i32, %c0_i32_0 : i32, i32
  }
  func.func @transform_4(%arg0: i32) -> (i32, i32, i32) {
    %c0_i32 = arith.constant 0 : i32
    %c0_i32_0 = arith.constant 0 : i32
    %c0_i32_1 = arith.constant 0 : i32
    return %arg0, %c0_i32, %c0_i32_0 : i32, i32, i32
  }
}

</mosaic_0001>

<llo_original>
// kernel: forward.1
$region0: #{forward.1}
  #allocation0 [shape = 'u32[]', space=smem, size = 0x4, offset = 0x4, fixed_abs, tag = 'smem constant byte address 0x4 - core index']
  #allocation1 [shape = 'u32[72,128]{1,0:T(1,128)}', space=vmem, size = 0x9000, scoped, tag = 'internal scratch']
  %s0 = inlined_call_operand.vmem [shape: bf16[8,16,16], index: 0, kind: input, shape index: {}]
  %s1 = inlined_call_operand.vmem [shape: bf16[8,16,128], index: 1, kind: input, shape index: {}]
  %s2 = inlined_call_operand.vmem [shape: bf16[256,128], index: 2, kind: input, shape index: {}]
  %s3 = inlined_call_operand.vmem [shape: f32[2,128], index: 3, kind: input, shape index: {}]
  %s4 = inlined_call_operand.vmem [shape: f32[8,8,128], index: 4, kind: output, shape index: {}]
  %s5 = sld [smem:[#allocation0]]
  $region49: #{forward.1} parent=0
    _
  %s7 = ssub.s32 1, %s5
  %s8 = scalar_select 0, %s7, %s5
  loop: start=0, step=1, limit=10
  $region2: #{forward.1} parent=0 // loop_pre_header
    _
  $region3: #{forward.1} parent=0 // loop_header
    %s10 = sphi 0, %s14
    %p11 = scmp.ge.s32.totalorder %s10, 10
    %s20 = sphi 0, %s22
    %s23 = sphi 0, %s20
    %s24 = sphi 0, %s23
    %s40 = sphi 0, %s24
    %s46 = sphi 0, %s48
    %s49 = sphi 0, %s46
    %s50 = sphi 0, %s49
    %s66 = sphi 0, %s50
    %s70 = sphi 0, %s70
    %s72 = sphi 0, %s70
    %s73 = sphi 0, %s72
    %s87 = sphi 0, %s73
    %s91 = sphi 0, %s91
    %s93 = sphi 0, %s91
    %s94 = sphi 0, %s93
    %s108 = sphi 0, %s94
    %s114 = sphi 0, %s116
    %s117 = sphi 0, %s114
    %s118 = sphi 0, %s117
    %s134 = sphi 0, %s118
  $region4: #{forward.1} parent=0 // loop_header_branch
    %13 = sbr.rel (%p11) target = $region8
  $region5: #{forward.1} parent=0 // loop_body
    %s15 = ssub.s32 %s10, 1
    %s16 = ssub.s32 %s10, 2
    %s17 = sadd.s32 %s10, 1
    %s18 = ssub.s32 %s10, %s17
    %p19 = scmp.eq.s32.totalorder %s18, 0
    %s21 = sadd.s32 %s20, 1
    %s22 = scalar_select %p19, %s20, %s21
    %p25 = pneg %p19
    %p26 = scmp.eq.s32.totalorder %s10, 7
    %p27 = por %p25, %p26
    %p28 = scmp.ne.s32.totalorder %s20, %s23
    %p29 = scmp.eq.s32.totalorder %s10, 0
    %p30 = por %p28, %p29
    %p31 = scmp.ne.s32.totalorder %s20, %s23
    %p32 = scmp.eq.s32.totalorder %s15, 7
    %p33 = por %p31, %p32
    %p34 = scmp.ne.s32.totalorder %s23, %s24
    %p35 = scmp.eq.s32.totalorder %s15, 0
    %p36 = por %p34, %p35
    %p37 = scmp.ne.s32.totalorder %s23, %s24
    %p38 = scmp.eq.s32.totalorder %s16, 7
    %p39 = por %p37, %p38
    %p41 = scmp.ne.s32.totalorder %s24, %s40
    %p42 = scmp.eq.s32.totalorder %s16, 0
    %p43 = por %p41, %p42
    %s44 = ssub.s32 %s10, %s17
    %p45 = scmp.eq.s32.totalorder %s44, 0
    %s47 = sadd.s32 %s46, 1
    %s48 = scalar_select %p45, %s46, %s47
    %p51 = pneg %p45
    %p52 = scmp.eq.s32.totalorder %s10, 7
    %p53 = por %p51, %p52
    %p54 = scmp.ne.s32.totalorder %s46, %s49
    %p55 = scmp.eq.s32.totalorder %s10, 0
    %p56 = por %p54, %p55
    %p57 = scmp.ne.s32.totalorder %s46, %s49
    %p58 = scmp.eq.s32.totalorder %s15, 7
    %p59 = por %p57, %p58
    %p60 = scmp.ne.s32.totalorder %s49, %s50
    %p61 = scmp.eq.s32.totalorder %s15, 0
    %p62 = por %p60, %p61
    %p63 = scmp.ne.s32.totalorder %s49, %s50
    %p64 = scmp.eq.s32.totalorder %s16, 7
    %p65 = por %p63, %p64
    %p67 = scmp.ne.s32.totalorder %s50, %s66
    %p68 = scmp.eq.s32.totalorder %s16, 0
    %p69 = por %p67, %p68
    %s71 = sadd.s32 %s70, 1
    %p74 = scmp.eq.s32.totalorder %s10, 7
    %p75 = scmp.ne.s32.totalorder %s70, %s72
    %p76 = scmp.eq.s32.totalorder %s10, 0
    %p77 = por %p75, %p76
    %p78 = scmp.ne.s32.totalorder %s70, %s72
    %p79 = scmp.eq.s32.totalorder %s15, 7
    %p80 = por %p78, %p79
    %p81 = scmp.ne.s32.totalorder %s72, %s73
    %p82 = scmp.eq.s32.totalorder %s15, 0
    %p83 = por %p81, %p82
    %p84 = scmp.ne.s32.totalorder %s72, %s73
    %p85 = scmp.eq.s32.totalorder %s16, 7
    %p86 = por %p84, %p85
    %p88 = scmp.ne.s32.totalorder %s73, %s87
    %p89 = scmp.eq.s32.totalorder %s16, 0
    %p90 = por %p88, %p89
    %s92 = sadd.s32 %s91, 1
    %p95 = scmp.eq.s32.totalorder %s10, 7
    %p96 = scmp.ne.s32.totalorder %s91, %s93
    %p97 = scmp.eq.s32.totalorder %s10, 0
    %p98 = por %p96, %p97
    %p99 = scmp.ne.s32.totalorder %s91, %s93
    %p100 = scmp.eq.s32.totalorder %s15, 7
    %p101 = por %p99, %p100
    %p102 = scmp.ne.s32.totalorder %s93, %s94
    %p103 = scmp.eq.s32.totalorder %s15, 0
    %p104 = por %p102, %p103
    %p105 = scmp.ne.s32.totalorder %s93, %s94
    %p106 = scmp.eq.s32.totalorder %s16, 7
    %p107 = por %p105, %p106
    %p109 = scmp.ne.s32.totalorder %s94, %s108
    %p110 = scmp.eq.s32.totalorder %s16, 0
    %p111 = por %p109, %p110
    %s112 = ssub.s32 %s10, %s17
    %p113 = scmp.eq.s32.totalorder %s112, 0
    %s115 = sadd.s32 %s114, 1
    %s116 = scalar_select %p113, %s114, %s115
    %p119 = pneg %p113
    %p120 = scmp.eq.s32.totalorder %s10, 7
    %p121 = por %p119, %p120
    %p122 = scmp.ne.s32.totalorder %s114, %s117
    %p123 = scmp.eq.s32.totalorder %s10, 0
    %p124 = por %p122, %p123
    %p125 = scmp.ne.s32.totalorder %s114, %s117
    %p126 = scmp.eq.s32.totalorder %s15, 7
    %p127 = por %p125, %p126
    %p128 = scmp.ne.s32.totalorder %s117, %s118
    %p129 = scmp.eq.s32.totalorder %s15, 0
    %p130 = por %p128, %p129
    %p131 = scmp.ne.s32.totalorder %s117, %s118
    %p132 = scmp.eq.s32.totalorder %s16, 7
    %p133 = por %p131, %p132
    %p135 = scmp.ne.s32.totalorder %s118, %s134
    %p136 = scmp.eq.s32.totalorder %s16, 0
    %p137 = por %p135, %p136
    %p138 = scmp.le.s32.totalorder 1, %s10
    %p139 = scmp.lt.s32.totalorder %s10, 9
    %p140 = pnand %p138, %p139
    %p141 = pneg %p140
    // Predicated region
    $region9: #{forward.1} parent=5 // pred_check
      _
    $region10: #{forward.1} parent=5 // pred_check_branch
      %143 = sbr.rel (%p140) target = $region12
    $region11: #{forward.1} parent=5 // pred_region
      %s144 = ssub.s32 %s10, 1
      // Predicated region
      $region13: #{forward.1} parent=11 // pred_check
        %p145 = pneg %p83
      $region14: #{forward.1} parent=11 // pred_check_branch
        %147 = sbr.rel (%p145) target = $region16
      $region15: #{forward.1} parent=11 // pred_region
        _
      $region16: #{forward.1} parent=11 // pred_fallthru
        _
      // Predicated region
      $region17: #{forward.1} parent=11 // pred_check
        %p148 = pneg %p104
      $region18: #{forward.1} parent=11 // pred_check_branch
        %150 = sbr.rel (%p148) target = $region20
      $region19: #{forward.1} parent=11 // pred_region
        _
      $region20: #{forward.1} parent=11 // pred_fallthru
        _
    $region12: #{forward.1} parent=5 // pred_fallthru
      _
    %p151 = scmp.lt.s32.totalorder %s10, 8
    // Predicated region
    $region21: #{forward.1} parent=5 // pred_check
      %p152 = pneg %p151
    $region22: #{forward.1} parent=5 // pred_check_branch
      %154 = sbr.rel (%p152) target = $region24
    $region23: #{forward.1} parent=5 // pred_region
      // Predicated region
      $region25: #{forward.1} parent=23 // pred_check
        %p155 = pneg %p30
      $region26: #{forward.1} parent=23 // pred_check_branch
        %157 = sbr.rel (%p155) target = $region28
      $region27: #{forward.1} parent=23 // pred_region
        %p158 = scmp.lt.s32.totalorder %s10, 7
        %s159 = scalar_select %p158, %s10, 7
        %s160 = smul.addr %s159, 2
        %s161 = smul.addr %s160, 4
        %s162 = scalar_lea.vmem %s0, %s161
      $region28: #{forward.1} parent=23 // pred_fallthru
        _
      // Predicated region
      $region29: #{forward.1} parent=23 // pred_check
        %p163 = pneg %p56
      $region30: #{forward.1} parent=23 // pred_check_branch
        %165 = sbr.rel (%p163) target = $region32
      $region31: #{forward.1} parent=23 // pred_region
        %p166 = scmp.lt.s32.totalorder %s10, 7
        %s167 = scalar_select %p166, %s10, 7
        %s168 = smul.addr %s167, 2
        %s169 = smul.addr %s168, 4
        %s170 = scalar_lea.vmem %s1, %s169
      $region32: #{forward.1} parent=23 // pred_fallthru
        _
    $region24: #{forward.1} parent=5 // pred_fallthru
      _
    %p171 = scmp.le.s32.totalorder 1, %s10
    %p172 = scmp.lt.s32.totalorder %s10, 9
    %p173 = pnand %p171, %p172
    %p174 = pneg %p173
    // Predicated region
    $region33: #{forward.1} parent=5 // pred_check
      _
    $region34: #{forward.1} parent=5 // pred_check_branch
      %176 = sbr.rel (%p173) target = $region36
    $region35: #{forward.1} parent=5 // pred_region
      %s177 = ssub.s32 %s10, 1
      %p178 = scmp.lt.s32.totalorder %s15, 7
      %s179 = scalar_select %p178, %s15, 7
      %s180 = smul.addr %s179, 2
      %s181 = smul.addr %s180, 4
      %s182 = scalar_lea.vmem %s0, %s181
      %p183 = pneg %p36
      %p184 = pneg %p33
      %p185 = scmp.lt.s32.totalorder %s15, 7
      %s186 = scalar_select %p185, %s15, 7
      %s187 = smul.addr %s186, 2
      %s188 = smul.addr %s187, 4
      %s189 = scalar_lea.vmem %s1, %s188
      %p190 = pneg %p62
      %p191 = pneg %p59
      %p192 = pneg %p83
      %p193 = pneg %p80
      %p194 = pneg %p104
      %p195 = pneg %p101
      %p196 = pneg %p130
      %p197 = pneg %p127
      %p198 = scmp.lt.s32.totalorder %s15, 7
      %s199 = scalar_select %p198, %s15, 7
      %s200 = smul.addr %s199, 8
      %s201 = scalar_lea.vmem %s4, %s200
      %p202 = scmp.lt.s32.totalorder %s15, 7
      %s203 = scalar_select %p202, %s15, 7
      %s204 = smul.addr %s203, 2
      %s205 = smul.addr %s204, 4
      %s206 = scalar_lea.vmem %s0, %s205
      %p207 = scmp.lt.s32.totalorder %s15, 7
      %s208 = scalar_select %p207, %s15, 7
      %s209 = smul.addr %s208, 2
      %s210 = smul.addr %s209, 4
      %s211 = scalar_lea.vmem %s1, %s210
      %p212 = scmp.lt.s32.totalorder %s15, 7
      %s213 = scalar_select %p212, %s15, 7
      %s214 = smul.addr %s213, 8
      %s215 = scalar_lea.vmem %s4, %s214
      %v217 = vld [vmem:[%s206] sm:$0xf]
      %v218 = vld [vmem:[%s206 + $0x4] sm:$0xf]
      %v219 = vld [vmem:[%s211] sm:$0xf]
      %v220 = vld [vmem:[%s211 + $0x4] sm:$0xf]
      %v221 = vld [vmem:[%s2] sm:$0xf]
      %v222 = vld [vmem:[%s2 + $0x4] sm:$0xf]
      %v223 = vld [vmem:[%s2 + $0x8] sm:$0xf]
      %v224 = vld [vmem:[%s2 + $0xc] sm:$0xf]
      %v225 = vld [vmem:[%s2 + $0x10] sm:$0xf]
      %v226 = vld [vmem:[%s2 + $0x14] sm:$0xf]
      %v227 = vld [vmem:[%s2 + $0x18] sm:$0xf]
      %v228 = vld [vmem:[%s2 + $0x1c] sm:$0xf]
      %v229 = vld [vmem:[%s2 + $0x20] sm:$0xf]
      %v230 = vld [vmem:[%s2 + $0x24] sm:$0xf]
      %v231 = vld [vmem:[%s2 + $0x28] sm:$0xf]
      %v232 = vld [vmem:[%s2 + $0x2c] sm:$0xf]
      %v233 = vld [vmem:[%s2 + $0x30] sm:$0xf]
      %v234 = vld [vmem:[%s2 + $0x34] sm:$0xf]
      %v235 = vld [vmem:[%s2 + $0x38] sm:$0xf]
      %v236 = vld [vmem:[%s2 + $0x3c] sm:$0xf]
      %v237 = vld [vmem:[%s2 + $0x40] sm:$0xf]
      %v238 = vld [vmem:[%s2 + $0x44] sm:$0xf]
      %v239 = vld [vmem:[%s2 + $0x48] sm:$0xf]
      %v240 = vld [vmem:[%s2 + $0x4c] sm:$0xf]
      %v241 = vld [vmem:[%s2 + $0x50] sm:$0xf]
      %v242 = vld [vmem:[%s2 + $0x54] sm:$0xf]
      %v243 = vld [vmem:[%s2 + $0x58] sm:$0xf]
      %v244 = vld [vmem:[%s2 + $0x5c] sm:$0xf]
      %v245 = vld [vmem:[%s2 + $0x60] sm:$0xf]
      %v246 = vld [vmem:[%s2 + $0x64] sm:$0xf]
      %v247 = vld [vmem:[%s2 + $0x68] sm:$0xf]
      %v248 = vld [vmem:[%s2 + $0x6c] sm:$0xf]
      %v249 = vld [vmem:[%s2 + $0x70] sm:$0xf]
      %v250 = vld [vmem:[%s2 + $0x74] sm:$0xf]
      %v251 = vld [vmem:[%s2 + $0x78] sm:$0xf]
      %v252 = vld [vmem:[%s2 + $0x7c] sm:$0xf]
      %v253 = vld [vmem:[%s3] sm:$0x1]
      %v254 = vld [vmem:[%s3 + $0x1] sm:$0x1]
      %v257 = vunpack.c.l.b16 %v219
      %v258 = vunpack.c.l.b16 %v220
      %v259 = vpack.c.b16 %v258, %v257
      %v277 = vunpack.c.l.b16 %v221
      %v278 = vunpack.c.l.b16 %v222
      %v279 = vunpack.c.l.b16 %v223
      %v280 = vunpack.c.l.b16 %v224
      %v281 = vunpack.c.l.b16 %v225
      %v282 = vunpack.c.l.b16 %v226
      %v283 = vunpack.c.l.b16 %v227
      %v284 = vunpack.c.l.b16 %v228
      %v285 = vunpack.c.l.b16 %v229
      %v286 = vunpack.c.l.b16 %v230
      %v287 = vunpack.c.l.b16 %v231
      %v288 = vunpack.c.l.b16 %v232
      %v289 = vunpack.c.l.b16 %v233
      %v290 = vunpack.c.l.b16 %v234
      %v291 = vunpack.c.l.b16 %v235
      %v292 = vunpack.c.l.b16 %v236
      %v293 = vpack.c.b16 %v278, %v277
      %v294 = vpack.c.b16 %v280, %v279
      %v295 = vpack.c.b16 %v282, %v281
      %v296 = vpack.c.b16 %v284, %v283
      %v297 = vpack.c.b16 %v286, %v285
      %v298 = vpack.c.b16 %v288, %v287
      %v299 = vpack.c.b16 %v290, %v289
      %v300 = vpack.c.b16 %v292, %v291
      %309 = vmatpush.bf16.msra.mxu0 %v300
      %310 = vmatpush.bf16.msra.mxu0 %v299
      %311 = vmatpush.bf16.msra.mxu0 %v298
      %312 = vmatpush.bf16.msra.mxu0 %v297
      %313 = vmatpush.bf16.msra.mxu0 %v296
      %314 = vmatpush.bf16.msra.mxu0 %v295
      %315 = vmatpush.bf16.msra.mxu0 %v294
      %316 = vmatpush.bf16.msra.mxu0 %v293
      %317 = vmatmul.bf16.gmra.mxu0 %v259
      %v318 = vpop.f32.mrf.mxu0
      %v319 = vadd.f32 0.0, %v318
      %v320 = vpop.f32.mrf.mxu0
      %v321 = vadd.f32 0.0, %v320
      %322 = vdwg.mxu0
      %v323 = vpack.c.bf16 %v321, %v319
      %v324 = vperm.slane %v253, 0
      %v327 = vunpack.c.l.b16 %v217
      %v328 = vunpack.c.l.b16 %v218
      %v329 = vpack.c.b16 %v328, %v327
      %vm330 = vcmask 130048
      %v332 = vsel %vm330, %v329, 0
      %334 = vmatpush.bf16.msra.mxu0 0
      %335 = vmatpush.bf16.msra.mxu0 0
      %336 = vmatpush.bf16.msra.mxu0 0
      %337 = vmatpush.bf16.msra.mxu0 0
      %338 = vmatpush.bf16.msra.mxu0 0
      %339 = vmatpush.bf16.msra.mxu0 0
      %340 = vmatpush.bf16.msra.mxu0 0
      %341 = vmatpush.bf16.msra.mxu0 %v323
      %342 = vmatmul.bf16.gmra.mxu0 %v332
      %v343 = vpop.f32.mrf.mxu0
      %v344 = vadd.f32 %v324, %v343
      %v345 = vpop.f32.mrf.mxu0
      %v346 = vadd.f32 %v324, %v345
      %347 = vdwg.mxu0
      %v348 = vmax.f32 %v344, 0.0
      %v349 = vmax.f32 %v346, 0.0
      %v350 = vunpack.c.l.bf16 %v217
      %v351 = vunpack.c.l.bf16 %v218
      %v352 = vsel %vm330, %v350, 0.0
      %v353 = vsel %vm330, %v351, 0.0
      %v354 = vadd.f32 %v352, %v353
      %v355 = vrot.slane %v354, 4
      %v356 = vadd.f32 %v354, %v355
      %v357 = vrot.slane %v356, 2
      %v358 = vadd.f32 %v356, %v357
      %v359 = vrot.slane %v358, 1
      %v360 = vadd.f32 %v358, %v359
      %v361 = vrcp.pop 16.0
      %v362 = vmul.f32 16.0, %v361
      %v363 = vsub.f32 1.0, %v362
      %v364 = vmul.f32 %v361, %v363
      %v365 = vadd.f32 %v361, %v364
      %vm366 = vweird.f32 %v361
      %v367 = vsel %vm366, %v361, %v365
      %v368 = vmul.f32 %v360, %v367
      %v369 = vpack.c.bf16 %v368, %v368
      %v370 = vpack.c.bf16 %v349, %v348
      %v372 = vsel %vm330, %v369, 0
      %374 = vmatpush.bf16.msra.mxu0 0
      %375 = vmatpush.bf16.msra.mxu0 0
      %376 = vmatpush.bf16.msra.mxu0 0
      %377 = vmatpush.bf16.msra.mxu0 0
      %378 = vmatpush.bf16.msra.mxu0 0
      %379 = vmatpush.bf16.msra.mxu0 0
      %380 = vmatpush.bf16.msra.mxu0 0
      %381 = vmatpush.bf16.msra.mxu0 %v370
      %382 = vmatmul.bf16.gmra.mxu0 %v372
      %v383 = vpop.f32.mrf.mxu0
      %v384 = vadd.f32 0.0, %v383
      %v385 = vpop.f32.mrf.mxu0
      %386 = vdwg.mxu0
      %v387 = vpack.c.bf16 %v384, %v384
      %v404 = vunpack.c.l.b16 %v237
      %v405 = vunpack.c.l.b16 %v238
      %v406 = vunpack.c.l.b16 %v239
      %v407 = vunpack.c.l.b16 %v240
      %v408 = vunpack.c.l.b16 %v241
      %v409 = vunpack.c.l.b16 %v242
      %v410 = vunpack.c.l.b16 %v243
      %v411 = vunpack.c.l.b16 %v244
      %v412 = vunpack.c.l.b16 %v245
      %v413 = vunpack.c.l.b16 %v246
      %v414 = vunpack.c.l.b16 %v247
      %v415 = vunpack.c.l.b16 %v248
      %v416 = vunpack.c.l.b16 %v249
      %v417 = vunpack.c.l.b16 %v250
      %v418 = vunpack.c.l.b16 %v251
      %v419 = vunpack.c.l.b16 %v252
      %v420 = vpack.c.b16 %v405, %v404
      %v421 = vpack.c.b16 %v407, %v406
      %v422 = vpack.c.b16 %v409, %v408
      %v423 = vpack.c.b16 %v411, %v410
      %v424 = vpack.c.b16 %v413, %v412
      %v425 = vpack.c.b16 %v415, %v414
      %v426 = vpack.c.b16 %v417, %v416
      %v427 = vpack.c.b16 %v419, %v418
      %436 = vmatpush.bf16.msra.mxu0 %v427
      %437 = vmatpush.bf16.msra.mxu0 %v426
      %438 = vmatpush.bf16.msra.mxu0 %v425
      %439 = vmatpush.bf16.msra.mxu0 %v424
      %440 = vmatpush.bf16.msra.mxu0 %v423
      %441 = vmatpush.bf16.msra.mxu0 %v422
      %442 = vmatpush.bf16.msra.mxu0 %v421
      %443 = vmatpush.bf16.msra.mxu0 %v420
      %444 = vmatmul.bf16.gmra.mxu0 %v387
      %v445 = vpop.f32.mrf.mxu0
      %v446 = vadd.f32 %v254, %v445
      %v447 = vpop.f32.mrf.mxu0
      %448 = vdwg.mxu0
      %v449 = vperm.slane %v446, 0
      %450 = vst [vmem:[%s215] sm:$0xff] %v449
      %p451 = scmp.lt.s32.totalorder %s15, 7
      %s452 = scalar_select %p451, %s15, 7
      %s453 = smul.addr %s452, 8
      %s454 = scalar_lea.vmem %s4, %s453
      // Predicated region
      $region37: #{forward.1} parent=35 // pred_check
        %p455 = pneg %p127
      $region38: #{forward.1} parent=35 // pred_check_branch
        %457 = sbr.rel (%p455) target = $region40
      $region39: #{forward.1} parent=35 // pred_region
        _
      $region40: #{forward.1} parent=35 // pred_fallthru
        _
    $region36: #{forward.1} parent=5 // pred_fallthru
      _
    %p458 = scmp.le.s32.totalorder 2, %s10
    // Predicated region
    $region41: #{forward.1} parent=5 // pred_check
      %p459 = pneg %p458
    $region42: #{forward.1} parent=5 // pred_check_branch
      %461 = sbr.rel (%p459) target = $region44
    $region43: #{forward.1} parent=5 // pred_region
      %s462 = ssub.s32 %s10, 2
      // Predicated region
      $region45: #{forward.1} parent=43 // pred_check
        %p463 = pneg %p133
      $region46: #{forward.1} parent=43 // pred_check_branch
        %465 = sbr.rel (%p463) target = $region48
      $region47: #{forward.1} parent=43 // pred_region
        %p466 = scmp.lt.s32.totalorder %s16, 7
        %s467 = scalar_select %p466, %s16, 7
        %s468 = smul.addr %s467, 8
        %s469 = scalar_lea.vmem %s4, %s468
      $region48: #{forward.1} parent=43 // pred_fallthru
        _
    $region44: #{forward.1} parent=5 // pred_fallthru
      _
  $region6: #{forward.1} parent=0 // loop_footer
    %s14 = sadd.s32 1, %s10
  $region7: #{forward.1} parent=0 // loop_footer_branch
    %9 = sbr.rel target = $region3
  $region8: #{forward.1} parent=0 // loop_exit
    _

</llo_original>
